<compile_context>
chip_gen: v5e
topology: v5e:2x2
jax: 0.10.0
libtpu: 0.0.40
codegen_flags: <defaults>
</compile_context>

<pallas_src>
import functools

import jax
import jax.numpy as jnp
from jax import lax
from jax.experimental import pallas as pl
from jax.experimental.pallas import tpu as pltpu

block_size = 32
n_embed = 128


# ----------------------------------------------------------------------------
# Fused kernel: stacked QKV projection + per-head causal attention + per-head
# accumulated output projection.  One grid step = Bt batch elements.
# ----------------------------------------------------------------------------
def _mha_fused_kernel(x_ref, wqkv_ref, wp_ref, bp_ref, o_ref,
                      *, num_heads, head_size, mxu_dtype):
    Bt, T, C = x_ref.shape
    D = num_heads * head_size
    E = o_ref.shape[-1]
    R = Bt * T                                   # flattened row count

    # ---- stacked QKV projection on the flattened (R, C) slab --------------
    xf = x_ref[...].reshape(R, C).astype(mxu_dtype)
    wqkv = wqkv_ref[...]                         # (C, 3D), scale folded into Q
    qkv = jnp.dot(xf, wqkv, preferred_element_type=jnp.float32)   # (R, 3D) f32

    # ---- causal mask (shared across heads & batch) -------------------------
    row = lax.broadcasted_iota(jnp.int32, (T, T), 0)
    col = lax.broadcasted_iota(jnp.int32, (T, T), 1)
    causal = (col <= row)[None]                  # (1, T, T), broadcast over Bt

    # ---- per-head attention, accumulated straight into the out-projection --
    acc = jnp.zeros((R, E), jnp.float32)
    for h in range(num_heads):                   # static loop, small H
        lo = h * head_size
        hi = lo + head_size
        qh = qkv[:, 0 * D + lo:0 * D + hi].reshape(Bt, T, head_size)
        kh = qkv[:, 1 * D + lo:1 * D + hi].reshape(Bt, T, head_size)
        vh = qkv[:, 2 * D + lo:2 * D + hi].reshape(Bt, T, head_size)

        # scores (scale already folded into q); batched over Bt on the MXU.
        s = jnp.einsum('bqd,bkd->bqk', qh.astype(mxu_dtype), kh.astype(mxu_dtype),
                       preferred_element_type=jnp.float32)        # (Bt, T, T)
        s = jnp.where(causal, s, -jnp.inf)       # diagonal always unmasked
        s = s - jnp.max(s, axis=-1, keepdims=True)
        p = jnp.exp(s)
        p = p * pl.reciprocal(jnp.sum(p, axis=-1, keepdims=True), approx=True)

        ctx = jnp.einsum('bqk,bkd->bqd', p.astype(mxu_dtype), vh.astype(mxu_dtype),
                         preferred_element_type=jnp.float32)      # (Bt, T, hs)

        # per-head output projection chunk: (R, hs) @ (hs, E) -> (R, E)
        wp_h = wp_ref[lo:hi, :]                  # sublane slice at 32-row mult.
        acc = acc + jnp.dot(ctx.reshape(R, head_size).astype(mxu_dtype), wp_h,
                            preferred_element_type=jnp.float32)

    y = acc + bp_ref[...].astype(jnp.float32)    # (R, E), lane-dense (E = 128)
    o_ref[...] = y.reshape(Bt, T, E).astype(o_ref.dtype)


def _pick_bt(B, cap=64):
    """Largest divisor of B <= cap; then prefer >=2 grid steps (v7x megacore)."""
    bt = 1
    for d in range(1, min(B, cap) + 1):
        if B % d == 0:
            bt = d
    if B // bt < 2 and bt % 2 == 0:
        bt //= 2
    return bt


# ----------------------------------------------------------------------------
# Full module forward (eval mode).
# ----------------------------------------------------------------------------
def multi_head_attention(x, params, *, mxu_dtype=jnp.float32):
    """Equivalent of MultiHeadAttention.forward (eval mode).

    x: (B, T, C).  Returns (B, min(T, block_size), n_embed), matching the
    PyTorch module (which slices attention to the tril buffer size).
    """
    B, T, C = x.shape
    T_eff = min(T, block_size)
    # Only the first T_eff query/key/value rows contribute to the output
    # (wei[:, :T, :T], v[:, :T, :]); clamp before the kernel so no discarded
    # rows are computed.
    x_t = x[:, :T_eff, :]

    H, hs, _ = params["wq"].shape
    D = H * hs
    E = params["w_proj"].shape[0]
    # NOTE: reference module scales by C**-0.5 (C = n_embed), not hs**-0.5.
    scale = float(C) ** -0.5

    # Pre-stack / pre-transpose weights at trace time (free layout plumbing):
    #   wqkv: (C, 3*D) so the kernel does x @ wqkv; scale folded into Q cols.
    #   wp_t: (D, E)   so the kernel does ctx_h @ wp_t[h*hs:(h+1)*hs].
    wq = params["wq"].reshape(D, C) * scale
    wk = params["wk"].reshape(D, C)
    wv = params["wv"].reshape(D, C)
    wqkv = jnp.concatenate([wq, wk, wv], axis=0).T.astype(mxu_dtype)   # (C, 3D)
    wp_t = params["w_proj"].T.astype(mxu_dtype)                        # (D, E)
    bp = params["b_proj"].reshape(1, E)

    Bt = _pick_bt(B)
    grid = (B // Bt,)

    kernel = functools.partial(_mha_fused_kernel,
                               num_heads=H, head_size=hs, mxu_dtype=mxu_dtype)

    return pl.pallas_call(
        kernel,
        out_shape=jax.ShapeDtypeStruct((B, T_eff, E), jnp.float32),
        grid_spec=pltpu.PrefetchScalarGridSpec(
            num_scalar_prefetch=0,
            grid=grid,
            in_specs=[
                pl.BlockSpec((Bt, T_eff, C), lambda b: (b, 0, 0)),
                # Index-invariant weight blocks: stay resident in VMEM.
                pl.BlockSpec((C, 3 * D), lambda b: (0, 0)),
                pl.BlockSpec((D, E), lambda b: (0, 0)),
                pl.BlockSpec((1, E), lambda b: (0, 0)),
            ],
            out_specs=pl.BlockSpec((Bt, T_eff, E), lambda b: (b, 0, 0)),
        ),
        compiler_params=pltpu.CompilerParams(
            dimension_semantics=("parallel",)),   # megacore over batch blocks
    )(x_t, wqkv, wp_t, bp)


# ----------------------------------------------------------------------------
# Deterministic parameter init (PyTorch-style uniform bounds, synthetic values)
# ----------------------------------------------------------------------------
def init_params(key, num_heads, head_size):
    ks = jax.random.split(key, 5)
    lim_in = 1.0 / jnp.sqrt(n_embed)
    lim_proj = 1.0 / jnp.sqrt(num_heads * head_size)
    wq = jax.random.uniform(ks[0], (num_heads, head_size, n_embed),
                            jnp.float32, -lim_in, lim_in)
    wk = jax.random.uniform(ks[1], (num_heads, head_size, n_embed),
                            jnp.float32, -lim_in, lim_in)
    wv = jax.random.uniform(ks[2], (num_heads, head_size, n_embed),
                            jnp.float32, -lim_in, lim_in)
    w_proj = jax.random.uniform(ks[3], (n_embed, num_heads * head_size),
                                jnp.float32, -lim_proj, lim_proj)
    b_proj = jax.random.uniform(ks[4], (n_embed,),
                                jnp.float32, -lim_proj, lim_proj)
    return dict(wq=wq, wk=wk, wv=wv, w_proj=w_proj, b_proj=b_proj)


# ----------------------------------------------------------------------------
# Pure-JAX reference (mirrors the PyTorch forward, eval mode) for validation
# ----------------------------------------------------------------------------
def reference_forward(x, params):
    B, T, C = x.shape
    T_eff = min(T, block_size)
    outs = []
    for h in range(params["wq"].shape[0]):
        q = x @ params["wq"][h].T
        k = x @ params["wk"][h].T
        v = x @ params["wv"][h].T
        wei = (q @ jnp.swapaxes(k, -2, -1)) * (C ** -0.5)
        wei = wei[:, :T_eff, :T_eff]
        mask = jnp.tril(jnp.ones((T_eff, T_eff), dtype=bool))
        wei = jnp.where(mask, wei, -jnp.inf)
        wei = jax.nn.softmax(wei, axis=-1)
        outs.append(wei @ v[:, :T_eff, :])
    cat = jnp.concatenate(outs, axis=-1)
    return cat @ params["w_proj"].T + params["b_proj"]


if __name__ == "__main__":
    B, T = 2, 8
    num_heads, head_size = 4, 32   # 4 * 32 == n_embed == 128

    key = jax.random.PRNGKey(0)
    kx, kp = jax.random.split(key)
    x = jax.random.normal(kx, (B, T, n_embed), jnp.float32)
    params = init_params(kp, num_heads, head_size)

    out = multi_head_attention(x, params)
    out = jax.block_until_ready(out)

    ref = reference_forward(x, params)
    assert out.shape == (B, T, n_embed), out.shape
    # Slightly loosened tolerance: softmax denominator uses the EUP approximate
    # reciprocal (pl.reciprocal(..., approx=True)) and the attention scale is
    # folded into the Q weights; everything else is f32 exact.
    assert jnp.allclose(out, ref, atol=2e-3, rtol=2e-3), "mismatch vs reference"

    print("KERNEL_OK")
</pallas_src>

<mosaic_0001>
module attributes {stable_mosaic.version = 11 : i64} {
  func.func @_mha_fused_kernel(%arg0: i32, %arg1: memref<1x8x128xf32, #tpu.memory_space<vmem>>, %arg2: memref<128x384xf32, #tpu.memory_space<vmem>>, %arg3: memref<128x128xf32, #tpu.memory_space<vmem>>, %arg4: memref<1x128xf32, #tpu.memory_space<vmem>>, %arg5: memref<1x8x128xf32, #tpu.memory_space<vmem>>) attributes {dimension_semantics = [#tpu.dimension_semantics<parallel>], iteration_bounds = array<i64: 2>, scalar_prefetch = 0 : i64, scratch_operands = 0 : i64, tpu.core_type = #tpu.core_type<tc>, window_params = [{transform_indices = @transform_0, window_bounds = array<i64: 1, 8, 128>}, {pipeline_mode = #tpu.pipeline_mode<synchronous>, transform_indices = @transform_1, window_bounds = array<i64: 128, 384>}, {pipeline_mode = #tpu.pipeline_mode<synchronous>, transform_indices = @transform_2, window_bounds = array<i64: 128, 128>}, {pipeline_mode = #tpu.pipeline_mode<synchronous>, transform_indices = @transform_3, window_bounds = array<i64: 1, 128>}, {transform_indices = @transform_4, window_bounds = array<i64: 1, 8, 128>}]} {
    %c0 = arith.constant 0 : index
    %c0_0 = arith.constant 0 : index
    %c0_1 = arith.constant 0 : index
    %0 = vector.load %arg1[%c0, %c0_0, %c0_1] : memref<1x8x128xf32, #tpu.memory_space<vmem>>, vector<1x8x128xf32>
    %1 = vector.shape_cast %0 : vector<1x8x128xf32> to vector<8x128xf32>
    %c0_2 = arith.constant 0 : index
    %c0_3 = arith.constant 0 : index
    %2 = vector.load %arg2[%c0_2, %c0_3] : memref<128x384xf32, #tpu.memory_space<vmem>>, vector<128x384xf32>
    %cst = arith.constant dense<0.000000e+00> : vector<8x384xf32>
    %3 = tpu.matmul %1, %2, %cst {dimension_numbers = #tpu.dot_dimension_numbers<[1], [0], [0], [1], [0, 0, 1, 1], [], []>} : vector<8x128xf32>, vector<128x384xf32>, vector<8x384xf32> -> vector<8x384xf32>
    %4 = tpu.iota {dimensions = array<i32: 0>} : vector<8x8xi32>
    %5 = tpu.iota {dimensions = array<i32: 1>} : vector<8x8xi32>
    %6 = arith.cmpi sle, %5, %4 : vector<8x8xi32>
    %7 = vector.shape_cast %6 : vector<8x8xi1> to vector<1x8x8xi1>
    %cst_4 = arith.constant 0.000000e+00 : f32
    %8 = vector.broadcast %cst_4 : f32 to vector<8x128xf32>
    %9 = vector.extract_strided_slice %3 {offsets = [0, 0], sizes = [8, 32], strides = [1, 1]} : vector<8x384xf32> to vector<8x32xf32>
    %10 = vector.shape_cast %9 : vector<8x32xf32> to vector<1x8x32xf32>
    %11 = vector.extract_strided_slice %3 {offsets = [0, 128], sizes = [8, 32], strides = [1, 1]} : vector<8x384xf32> to vector<8x32xf32>
    %12 = vector.shape_cast %11 : vector<8x32xf32> to vector<1x8x32xf32>
    %13 = vector.extract_strided_slice %3 {offsets = [0, 256], sizes = [8, 32], strides = [1, 1]} : vector<8x384xf32> to vector<8x32xf32>
    %14 = vector.shape_cast %13 : vector<8x32xf32> to vector<1x8x32xf32>
    "tpu.trace_start"() <{level = 10 : i32, message = "bqd,bkd->bqk"}> : () -> ()
    %cst_5 = arith.constant dense<0.000000e+00> : vector<1x8x8xf32>
    %15 = tpu.matmul %10, %12, %cst_5 {dimension_numbers = #tpu.dot_dimension_numbers<[2], [2], [1], [1], [0, 0, 0, 1, 1, 1], [0], [0]>} : vector<1x8x32xf32>, vector<1x8x32xf32>, vector<1x8x8xf32> -> vector<1x8x8xf32>
    %cst_6 = arith.constant 0xFF800000 : f32
    "tpu.trace_stop"() : () -> ()
    %16 = vector.broadcast %cst_6 : f32 to vector<1x8x8xf32>
    %17 = arith.select %7, %15, %16 : vector<1x8x8xi1>, vector<1x8x8xf32>
    %cst_7 = arith.constant dense<0xFF800000> : vector<1x8xf32>
    %18 = vector.multi_reduction <maximumf>, %17, %cst_7 [2] : vector<1x8x8xf32> to vector<1x8xf32>
    %19 = vector.shape_cast %18 : vector<1x8xf32> to vector<1x8x1xf32>
    %20 = vector.broadcast %19 : vector<1x8x1xf32> to vector<1x8x8xf32>
    %21 = arith.subf %17, %20 : vector<1x8x8xf32>
    %22 = math.exp %21 : vector<1x8x8xf32>
    %cst_8 = arith.constant dense<0.000000e+00> : vector<1x8xf32>
    %23 = vector.multi_reduction <add>, %22, %cst_8 [2] : vector<1x8x8xf32> to vector<1x8xf32>
    %24 = vector.shape_cast %23 : vector<1x8xf32> to vector<1x8x1xf32>
    %25 = tpu.reciprocal %24 {approx = true} : vector<1x8x1xf32> -> vector<1x8x1xf32>
    %26 = vector.broadcast %25 : vector<1x8x1xf32> to vector<1x8x8xf32>
    %27 = arith.mulf %22, %26 : vector<1x8x8xf32>
    "tpu.trace_start"() <{level = 10 : i32, message = "bqk,bkd->bqd"}> : () -> ()
    %cst_9 = arith.constant dense<0.000000e+00> : vector<1x8x32xf32>
    %28 = tpu.matmul %27, %14, %cst_9 {dimension_numbers = #tpu.dot_dimension_numbers<[2], [1], [1], [2], [0, 0, 0, 1, 1, 2], [0], [0]>} : vector<1x8x8xf32>, vector<1x8x32xf32>, vector<1x8x32xf32> -> vector<1x8x32xf32>
    "tpu.trace_stop"() : () -> ()
    %c0_10 = arith.constant 0 : index
    %c0_11 = arith.constant 0 : index
    %29 = vector.load %arg3[%c0_10, %c0_11] : memref<128x128xf32, #tpu.memory_space<vmem>>, vector<32x128xf32>
    %30 = vector.shape_cast %28 : vector<1x8x32xf32> to vector<8x32xf32>
    %cst_12 = arith.constant dense<0.000000e+00> : vector<8x128xf32>
    %31 = tpu.matmul %30, %29, %cst_12 {dimension_numbers = #tpu.dot_dimension_numbers<[1], [0], [0], [1], [0, 0, 1, 1], [], []>} : vector<8x32xf32>, vector<32x128xf32>, vector<8x128xf32> -> vector<8x128xf32>
    %32 = arith.addf %8, %31 : vector<8x128xf32>
    %33 = vector.extract_strided_slice %3 {offsets = [0, 32], sizes = [8, 32], strides = [1, 1]} : vector<8x384xf32> to vector<8x32xf32>
    %34 = vector.shape_cast %33 : vector<8x32xf32> to vector<1x8x32xf32>
    %35 = vector.extract_strided_slice %3 {offsets = [0, 160], sizes = [8, 32], strides = [1, 1]} : vector<8x384xf32> to vector<8x32xf32>
    %36 = vector.shape_cast %35 : vector<8x32xf32> to vector<1x8x32xf32>
    %37 = vector.extract_strided_slice %3 {offsets = [0, 288], sizes = [8, 32], strides = [1, 1]} : vector<8x384xf32> to vector<8x32xf32>
    %38 = vector.shape_cast %37 : vector<8x32xf32> to vector<1x8x32xf32>
    "tpu.trace_start"() <{level = 10 : i32, message = "bqd,bkd->bqk"}> : () -> ()
    %cst_13 = arith.constant dense<0.000000e+00> : vector<1x8x8xf32>
    %39 = tpu.matmul %34, %36, %cst_13 {dimension_numbers = #tpu.dot_dimension_numbers<[2], [2], [1], [1], [0, 0, 0, 1, 1, 1], [0], [0]>} : vector<1x8x32xf32>, vector<1x8x32xf32>, vector<1x8x8xf32> -> vector<1x8x8xf32>
    %cst_14 = arith.constant 0xFF800000 : f32
    "tpu.trace_stop"() : () -> ()
    %40 = vector.broadcast %cst_14 : f32 to vector<1x8x8xf32>
    %41 = arith.select %7, %39, %40 : vector<1x8x8xi1>, vector<1x8x8xf32>
    %cst_15 = arith.constant dense<0xFF800000> : vector<1x8xf32>
    %42 = vector.multi_reduction <maximumf>, %41, %cst_15 [2] : vector<1x8x8xf32> to vector<1x8xf32>
    %43 = vector.shape_cast %42 : vector<1x8xf32> to vector<1x8x1xf32>
    %44 = vector.broadcast %43 : vector<1x8x1xf32> to vector<1x8x8xf32>
    %45 = arith.subf %41, %44 : vector<1x8x8xf32>
    %46 = math.exp %45 : vector<1x8x8xf32>
    %cst_16 = arith.constant dense<0.000000e+00> : vector<1x8xf32>
    %47 = vector.multi_reduction <add>, %46, %cst_16 [2] : vector<1x8x8xf32> to vector<1x8xf32>
    %48 = vector.shape_cast %47 : vector<1x8xf32> to vector<1x8x1xf32>
    %49 = tpu.reciprocal %48 {approx = true} : vector<1x8x1xf32> -> vector<1x8x1xf32>
    %50 = vector.broadcast %49 : vector<1x8x1xf32> to vector<1x8x8xf32>
    %51 = arith.mulf %46, %50 : vector<1x8x8xf32>
    "tpu.trace_start"() <{level = 10 : i32, message = "bqk,bkd->bqd"}> : () -> ()
    %cst_17 = arith.constant dense<0.000000e+00> : vector<1x8x32xf32>
    %52 = tpu.matmul %51, %38, %cst_17 {dimension_numbers = #tpu.dot_dimension_numbers<[2], [1], [1], [2], [0, 0, 0, 1, 1, 2], [0], [0]>} : vector<1x8x8xf32>, vector<1x8x32xf32>, vector<1x8x32xf32> -> vector<1x8x32xf32>
    "tpu.trace_stop"() : () -> ()
    %c32 = arith.constant 32 : index
    %c0_18 = arith.constant 0 : index
    %53 = vector.load %arg3[%c32, %c0_18] : memref<128x128xf32, #tpu.memory_space<vmem>>, vector<32x128xf32>
    %54 = vector.shape_cast %52 : vector<1x8x32xf32> to vector<8x32xf32>
    %cst_19 = arith.constant dense<0.000000e+00> : vector<8x128xf32>
    %55 = tpu.matmul %54, %53, %cst_19 {dimension_numbers = #tpu.dot_dimension_numbers<[1], [0], [0], [1], [0, 0, 1, 1], [], []>} : vector<8x32xf32>, vector<32x128xf32>, vector<8x128xf32> -> vector<8x128xf32>
    %56 = arith.addf %32, %55 : vector<8x128xf32>
    %57 = vector.extract_strided_slice %3 {offsets = [0, 64], sizes = [8, 32], strides = [1, 1]} : vector<8x384xf32> to vector<8x32xf32>
    %58 = vector.shape_cast %57 : vector<8x32xf32> to vector<1x8x32xf32>
    %59 = vector.extract_strided_slice %3 {offsets = [0, 192], sizes = [8, 32], strides = [1, 1]} : vector<8x384xf32> to vector<8x32xf32>
    %60 = vector.shape_cast %59 : vector<8x32xf32> to vector<1x8x32xf32>
    %61 = vector.extract_strided_slice %3 {offsets = [0, 320], sizes = [8, 32], strides = [1, 1]} : vector<8x384xf32> to vector<8x32xf32>
    %62 = vector.shape_cast %61 : vector<8x32xf32> to vector<1x8x32xf32>
    "tpu.trace_start"() <{level = 10 : i32, message = "bqd,bkd->bqk"}> : () -> ()
    %cst_20 = arith.constant dense<0.000000e+00> : vector<1x8x8xf32>
    %63 = tpu.matmul %58, %60, %cst_20 {dimension_numbers = #tpu.dot_dimension_numbers<[2], [2], [1], [1], [0, 0, 0, 1, 1, 1], [0], [0]>} : vector<1x8x32xf32>, vector<1x8x32xf32>, vector<1x8x8xf32> -> vector<1x8x8xf32>
    %cst_21 = arith.constant 0xFF800000 : f32
    "tpu.trace_stop"() : () -> ()
    %64 = vector.broadcast %cst_21 : f32 to vector<1x8x8xf32>
    %65 = arith.select %7, %63, %64 : vector<1x8x8xi1>, vector<1x8x8xf32>
    %cst_22 = arith.constant dense<0xFF800000> : vector<1x8xf32>
    %66 = vector.multi_reduction <maximumf>, %65, %cst_22 [2] : vector<1x8x8xf32> to vector<1x8xf32>
    %67 = vector.shape_cast %66 : vector<1x8xf32> to vector<1x8x1xf32>
    %68 = vector.broadcast %67 : vector<1x8x1xf32> to vector<1x8x8xf32>
    %69 = arith.subf %65, %68 : vector<1x8x8xf32>
    %70 = math.exp %69 : vector<1x8x8xf32>
    %cst_23 = arith.constant dense<0.000000e+00> : vector<1x8xf32>
    %71 = vector.multi_reduction <add>, %70, %cst_23 [2] : vector<1x8x8xf32> to vector<1x8xf32>
    %72 = vector.shape_cast %71 : vector<1x8xf32> to vector<1x8x1xf32>
    %73 = tpu.reciprocal %72 {approx = true} : vector<1x8x1xf32> -> vector<1x8x1xf32>
    %74 = vector.broadcast %73 : vector<1x8x1xf32> to vector<1x8x8xf32>
    %75 = arith.mulf %70, %74 : vector<1x8x8xf32>
    "tpu.trace_start"() <{level = 10 : i32, message = "bqk,bkd->bqd"}> : () -> ()
    %cst_24 = arith.constant dense<0.000000e+00> : vector<1x8x32xf32>
    %76 = tpu.matmul %75, %62, %cst_24 {dimension_numbers = #tpu.dot_dimension_numbers<[2], [1], [1], [2], [0, 0, 0, 1, 1, 2], [0], [0]>} : vector<1x8x8xf32>, vector<1x8x32xf32>, vector<1x8x32xf32> -> vector<1x8x32xf32>
    "tpu.trace_stop"() : () -> ()
    %c64 = arith.constant 64 : index
    %c0_25 = arith.constant 0 : index
    %77 = vector.load %arg3[%c64, %c0_25] : memref<128x128xf32, #tpu.memory_space<vmem>>, vector<32x128xf32>
    %78 = vector.shape_cast %76 : vector<1x8x32xf32> to vector<8x32xf32>
    %cst_26 = arith.constant dense<0.000000e+00> : vector<8x128xf32>
    %79 = tpu.matmul %78, %77, %cst_26 {dimension_numbers = #tpu.dot_dimension_numbers<[1], [0], [0], [1], [0, 0, 1, 1], [], []>} : vector<8x32xf32>, vector<32x128xf32>, vector<8x128xf32> -> vector<8x128xf32>
    %80 = arith.addf %56, %79 : vector<8x128xf32>
    %81 = vector.extract_strided_slice %3 {offsets = [0, 96], sizes = [8, 32], strides = [1, 1]} : vector<8x384xf32> to vector<8x32xf32>
    %82 = vector.shape_cast %81 : vector<8x32xf32> to vector<1x8x32xf32>
    %83 = vector.extract_strided_slice %3 {offsets = [0, 224], sizes = [8, 32], strides = [1, 1]} : vector<8x384xf32> to vector<8x32xf32>
    %84 = vector.shape_cast %83 : vector<8x32xf32> to vector<1x8x32xf32>
    %85 = vector.extract_strided_slice %3 {offsets = [0, 352], sizes = [8, 32], strides = [1, 1]} : vector<8x384xf32> to vector<8x32xf32>
    %86 = vector.shape_cast %85 : vector<8x32xf32> to vector<1x8x32xf32>
    "tpu.trace_start"() <{level = 10 : i32, message = "bqd,bkd->bqk"}> : () -> ()
    %cst_27 = arith.constant dense<0.000000e+00> : vector<1x8x8xf32>
    %87 = tpu.matmul %82, %84, %cst_27 {dimension_numbers = #tpu.dot_dimension_numbers<[2], [2], [1], [1], [0, 0, 0, 1, 1, 1], [0], [0]>} : vector<1x8x32xf32>, vector<1x8x32xf32>, vector<1x8x8xf32> -> vector<1x8x8xf32>
    %cst_28 = arith.constant 0xFF800000 : f32
    "tpu.trace_stop"() : () -> ()
    %88 = vector.broadcast %cst_28 : f32 to vector<1x8x8xf32>
    %89 = arith.select %7, %87, %88 : vector<1x8x8xi1>, vector<1x8x8xf32>
    %cst_29 = arith.constant dense<0xFF800000> : vector<1x8xf32>
    %90 = vector.multi_reduction <maximumf>, %89, %cst_29 [2] : vector<1x8x8xf32> to vector<1x8xf32>
    %91 = vector.shape_cast %90 : vector<1x8xf32> to vector<1x8x1xf32>
    %92 = vector.broadcast %91 : vector<1x8x1xf32> to vector<1x8x8xf32>
    %93 = arith.subf %89, %92 : vector<1x8x8xf32>
    %94 = math.exp %93 : vector<1x8x8xf32>
    %cst_30 = arith.constant dense<0.000000e+00> : vector<1x8xf32>
    %95 = vector.multi_reduction <add>, %94, %cst_30 [2] : vector<1x8x8xf32> to vector<1x8xf32>
    %96 = vector.shape_cast %95 : vector<1x8xf32> to vector<1x8x1xf32>
    %97 = tpu.reciprocal %96 {approx = true} : vector<1x8x1xf32> -> vector<1x8x1xf32>
    %98 = vector.broadcast %97 : vector<1x8x1xf32> to vector<1x8x8xf32>
    %99 = arith.mulf %94, %98 : vector<1x8x8xf32>
    "tpu.trace_start"() <{level = 10 : i32, message = "bqk,bkd->bqd"}> : () -> ()
    %cst_31 = arith.constant dense<0.000000e+00> : vector<1x8x32xf32>
    %100 = tpu.matmul %99, %86, %cst_31 {dimension_numbers = #tpu.dot_dimension_numbers<[2], [1], [1], [2], [0, 0, 0, 1, 1, 2], [0], [0]>} : vector<1x8x8xf32>, vector<1x8x32xf32>, vector<1x8x32xf32> -> vector<1x8x32xf32>
    "tpu.trace_stop"() : () -> ()
    %c96 = arith.constant 96 : index
    %c0_32 = arith.constant 0 : index
    %101 = vector.load %arg3[%c96, %c0_32] : memref<128x128xf32, #tpu.memory_space<vmem>>, vector<32x128xf32>
    %102 = vector.shape_cast %100 : vector<1x8x32xf32> to vector<8x32xf32>
    %cst_33 = arith.constant dense<0.000000e+00> : vector<8x128xf32>
    %103 = tpu.matmul %102, %101, %cst_33 {dimension_numbers = #tpu.dot_dimension_numbers<[1], [0], [0], [1], [0, 0, 1, 1], [], []>} : vector<8x32xf32>, vector<32x128xf32>, vector<8x128xf32> -> vector<8x128xf32>
    %104 = arith.addf %80, %103 : vector<8x128xf32>
    %c0_34 = arith.constant 0 : index
    %c0_35 = arith.constant 0 : index
    %105 = vector.load %arg4[%c0_34, %c0_35] : memref<1x128xf32, #tpu.memory_space<vmem>>, vector<1x128xf32>
    %106 = vector.broadcast %105 : vector<1x128xf32> to vector<8x128xf32>
    %107 = arith.addf %104, %106 : vector<8x128xf32>
    %108 = vector.shape_cast %107 : vector<8x128xf32> to vector<1x8x128xf32>
    %c0_36 = arith.constant 0 : index
    %c0_37 = arith.constant 0 : index
    %c0_38 = arith.constant 0 : index
    %109 = vector.load %arg5[%c0_36, %c0_37, %c0_38] : memref<1x8x128xf32, #tpu.memory_space<vmem>>, vector<1x8x128xf32>
    tpu.vector_store %arg5[%c0_36, %c0_37, %c0_38], %108 {strides = array<i32>} : memref<1x8x128xf32, #tpu.memory_space<vmem>>, vector<1x8x128xf32>,
    return
  }
  func.func @transform_0(%arg0: i32) -> (i32, i32, i32) {
    %c0_i32 = arith.constant 0 : i32
    %c0_i32_0 = arith.constant 0 : i32
    %c0_i32_1 = arith.constant 0 : i32
    return %arg0, %c0_i32, %c0_i32_0 : i32, i32, i32
  }
  func.func @transform_1(%arg0: i32) -> (i32, i32) {
    %c0_i32 = arith.constant 0 : i32
    %c0_i32_0 = arith.constant 0 : i32
    %c0_i32_1 = arith.constant 0 : i32
    return %c0_i32, %c0_i32_0 : i32, i32
  }
  func.func @transform_2(%arg0: i32) -> (i32, i32) {
    %c0_i32 = arith.constant 0 : i32
    %c0_i32_0 = arith.constant 0 : i32
    %c0_i32_1 = arith.constant 0 : i32
    return %c0_i32, %c0_i32_0 : i32, i32
  }
  func.func @transform_3(%arg0: i32) -> (i32, i32) {
    %c0_i32 = arith.constant 0 : i32
    %c0_i32_0 = arith.constant 0 : i32
    %c0_i32_1 = arith.constant 0 : i32
    return %c0_i32, %c0_i32_0 : i32, i32
  }
  func.func @transform_4(%arg0: i32) -> (i32, i32, i32) {
    %c0_i32 = arith.constant 0 : i32
    %c0_i32_0 = arith.constant 0 : i32
    %c0_i32_1 = arith.constant 0 : i32
    return %arg0, %c0_i32, %c0_i32_0 : i32, i32, i32
  }
}

</mosaic_0001>

<llo_original>
// kernel: tpu_custom_call.1
$region0: #{tpu_custom_call.1}
  #allocation0 [shape = 'u32[]', space=smem, size = 0x4, offset = 0x4, fixed_abs, tag = 'smem constant byte address 0x4 - core index']
  #allocation1 [shape = 'u32[72,128]{1,0:T(1,128)}', space=vmem, size = 0x9000, scoped, tag = 'internal scratch']
  %s0 = inlined_call_operand.hbm [shape: f32[2,8,128], index: 0, kind: input, shape index: {}]
  %s1 = inlined_call_operand.hbm [shape: f32[128,384], index: 1, kind: input, shape index: {}]
  %s2 = inlined_call_operand.hbm [shape: f32[128,128], index: 2, kind: input, shape index: {}]
  %s3 = inlined_call_operand.vmem [shape: f32[1,128], index: 3, kind: input, shape index: {}]
  %s4 = inlined_call_operand.hbm [shape: f32[2,8,128], index: 4, kind: output, shape index: {}]
  %s5 = sld [smem:[#allocation0]]
  $region61: #{tpu_custom_call.1} parent=0
    _
  %s7 = ssub.s32 1, %s5
  %s8 = scalar_select 0, %s7, %s5
  $region1: #{tpu_custom_call.1} parent=0
    #allocation2 [shape = 'u8[8192]{0}', space=vmem, size = 0x2000, scoped, tag = 'input window, operand 0']
    #allocation3 [shape = 's32[2]{0}', space=sflag, size = 0x8, scoped, tag = 'scoped memory for tpu_custom_call.1']
    #allocation4 [shape = 's32[2]{0}', space=sflag, size = 0x8, scoped, tag = 'scoped memory for tpu_custom_call.1']
    #allocation5 [shape = 'u8[196608]{0}', space=vmem, size = 0x30000, scoped, tag = 'input window, operand 1, single buffered']
    #allocation6 [shape = 's32[1]{0}', space=sflag, size = 0x4, scoped, tag = 'scoped memory for tpu_custom_call.1']
    #allocation7 [shape = 'u8[65536]{0}', space=vmem, size = 0x10000, scoped, tag = 'input window, operand 2, single buffered']
    #allocation8 [shape = 'u8[8192]{0}', space=vmem, size = 0x2000, scoped, tag = 'output window, operand 0']
    %9 = vsyncpa [#allocation3], 0
    %s10 = scalar_lea.sflag [#allocation3], 1
    %11 = vsyncpa %s10, 0
    %12 = vsyncpa [#allocation6], 0
    %13 = vsyncpa [#allocation4], 0
    %s14 = scalar_lea.sflag [#allocation4], 1
    %15 = vsyncpa %s14, 0
    loop: start=0, step=1, limit=4
    $region2: #{tpu_custom_call.1} parent=1 // loop_pre_header
      _
    $region3: #{tpu_custom_call.1} parent=1 // loop_header
      %s17 = sphi 0, %s21
      %p18 = scmp.ge.s32.totalorder %s17, 4
      %s27 = sphi 0, %s29
      %s30 = sphi 0, %s27
      %s31 = sphi 0, %s30
      %s47 = sphi 0, %s31
      %s51 = sphi 0, %s51
      %s53 = sphi 0, %s51
      %s54 = sphi 0, %s53
      %s68 = sphi 0, %s54
      %s72 = sphi 0, %s72
      %s74 = sphi 0, %s72
      %s75 = sphi 0, %s74
      %s89 = sphi 0, %s75
      %s93 = sphi 0, %s93
      %s95 = sphi 0, %s93
      %s96 = sphi 0, %s95
      %s110 = sphi 0, %s96
      %s116 = sphi 0, %s118
      %s119 = sphi 0, %s116
      %s120 = sphi 0, %s119
      %s136 = sphi 0, %s120
    $region4: #{tpu_custom_call.1} parent=1 // loop_header_branch
      %20 = sbr.rel (%p18) target = $region8
    $region5: #{tpu_custom_call.1} parent=1 // loop_body
      %s22 = ssub.s32 %s17, 1
      %s23 = ssub.s32 %s17, 2
      %s24 = sadd.s32 %s17, 1
      %s25 = ssub.s32 %s17, %s24
      %p26 = scmp.eq.s32.totalorder %s25, 0
      %s28 = sadd.s32 %s27, 1
      %s29 = scalar_select %p26, %s27, %s28
      %p32 = pneg %p26
      %p33 = scmp.eq.s32.totalorder %s17, 1
      %p34 = por %p32, %p33
      %p35 = scmp.ne.s32.totalorder %s27, %s30
      %p36 = scmp.eq.s32.totalorder %s17, 0
      %p37 = por %p35, %p36
      %p38 = scmp.ne.s32.totalorder %s27, %s30
      %p39 = scmp.eq.s32.totalorder %s22, 1
      %p40 = por %p38, %p39
      %p41 = scmp.ne.s32.totalorder %s30, %s31
      %p42 = scmp.eq.s32.totalorder %s22, 0
      %p43 = por %p41, %p42
      %p44 = scmp.ne.s32.totalorder %s30, %s31
      %p45 = scmp.eq.s32.totalorder %s23, 1
      %p46 = por %p44, %p45
      %p48 = scmp.ne.s32.totalorder %s31, %s47
      %p49 = scmp.eq.s32.totalorder %s23, 0
      %p50 = por %p48, %p49
      %s52 = sadd.s32 %s51, 1
      %p55 = scmp.eq.s32.totalorder %s17, 1
      %p56 = scmp.ne.s32.totalorder %s51, %s53
      %p57 = scmp.eq.s32.totalorder %s17, 0
      %p58 = por %p56, %p57
      %p59 = scmp.ne.s32.totalorder %s51, %s53
      %p60 = scmp.eq.s32.totalorder %s22, 1
      %p61 = por %p59, %p60
      %p62 = scmp.ne.s32.totalorder %s53, %s54
      %p63 = scmp.eq.s32.totalorder %s22, 0
      %p64 = por %p62, %p63
      %p65 = scmp.ne.s32.totalorder %s53, %s54
      %p66 = scmp.eq.s32.totalorder %s23, 1
      %p67 = por %p65, %p66
      %p69 = scmp.ne.s32.totalorder %s54, %s68
      %p70 = scmp.eq.s32.totalorder %s23, 0
      %p71 = por %p69, %p70
      %s73 = sadd.s32 %s72, 1
      %p76 = scmp.eq.s32.totalorder %s17, 1
      %p77 = scmp.ne.s32.totalorder %s72, %s74
      %p78 = scmp.eq.s32.totalorder %s17, 0
      %p79 = por %p77, %p78
      %p80 = scmp.ne.s32.totalorder %s72, %s74
      %p81 = scmp.eq.s32.totalorder %s22, 1
      %p82 = por %p80, %p81
      %p83 = scmp.ne.s32.totalorder %s74, %s75
      %p84 = scmp.eq.s32.totalorder %s22, 0
      %p85 = por %p83, %p84
      %p86 = scmp.ne.s32.totalorder %s74, %s75
      %p87 = scmp.eq.s32.totalorder %s23, 1
      %p88 = por %p86, %p87
      %p90 = scmp.ne.s32.totalorder %s75, %s89
      %p91 = scmp.eq.s32.totalorder %s23, 0
      %p92 = por %p90, %p91
      %s94 = sadd.s32 %s93, 1
      %p97 = scmp.eq.s32.totalorder %s17, 1
      %p98 = scmp.ne.s32.totalorder %s93, %s95
      %p99 = scmp.eq.s32.totalorder %s17, 0
      %p100 = por %p98, %p99
      %p101 = scmp.ne.s32.totalorder %s93, %s95
      %p102 = scmp.eq.s32.totalorder %s22, 1
      %p103 = por %p101, %p102
      %p104 = scmp.ne.s32.totalorder %s95, %s96
      %p105 = scmp.eq.s32.totalorder %s22, 0
      %p106 = por %p104, %p105
      %p107 = scmp.ne.s32.totalorder %s95, %s96
      %p108 = scmp.eq.s32.totalorder %s23, 1
      %p109 = por %p107, %p108
      %p111 = scmp.ne.s32.totalorder %s96, %s110
      %p112 = scmp.eq.s32.totalorder %s23, 0
      %p113 = por %p111, %p112
      %s114 = ssub.s32 %s17, %s24
      %p115 = scmp.eq.s32.totalorder %s114, 0
      %s117 = sadd.s32 %s116, 1
      %s118 = scalar_select %p115, %s116, %s117
      %p121 = pneg %p115
      %p122 = scmp.eq.s32.totalorder %s17, 1
      %p123 = por %p121, %p122
      %p124 = scmp.ne.s32.totalorder %s116, %s119
      %p125 = scmp.eq.s32.totalorder %s17, 0
      %p126 = por %p124, %p125
      %p127 = scmp.ne.s32.totalorder %s116, %s119
      %p128 = scmp.eq.s32.totalorder %s22, 1
      %p129 = por %p127, %p128
      %p130 = scmp.ne.s32.totalorder %s119, %s120
      %p131 = scmp.eq.s32.totalorder %s22, 0
      %p132 = por %p130, %p131
      %p133 = scmp.ne.s32.totalorder %s119, %s120
      %p134 = scmp.eq.s32.totalorder %s23, 1
      %p135 = por %p133, %p134
      %p137 = scmp.ne.s32.totalorder %s120, %s136
      %p138 = scmp.eq.s32.totalorder %s23, 0
      %p139 = por %p137, %p138
      %p140 = scmp.le.s32.totalorder 1, %s17
      %p141 = scmp.lt.s32.totalorder %s17, 3
      %p142 = pnand %p140, %p141
      %p143 = pneg %p142
      // Predicated region
      $region9: #{tpu_custom_call.1} parent=5 // pred_check
        _
      $region10: #{tpu_custom_call.1} parent=5 // pred_check_branch
        %145 = sbr.rel (%p142) target = $region12
      $region11: #{tpu_custom_call.1} parent=5 // pred_region
        %s146 = ssub.s32 %s17, 1
        // Predicated region
        $region13: #{tpu_custom_call.1} parent=11 // pred_check
          %p147 = pneg %p64
        $region14: #{tpu_custom_call.1} parent=11 // pred_check_branch
          %149 = sbr.rel (%p147) target = $region16
        $region15: #{tpu_custom_call.1} parent=11 // pred_region
          %151 = vsyncadd [#allocation6], 0
          %s152 = sshll.u32 %s1, 4
          %s153 = int_to_ptr.hbm [resolvable:$true] %s152
          %s154 = sshll.u32 [#allocation5], 4
          %s155 = int_to_ptr.vmem [resolvable:$true] %s154
          %160 = dma.hbm_to_vmem [thread:$0]  %s153, 6144, %s155, [#allocation6], 384, 384, 24
        $region16: #{tpu_custom_call.1} parent=11 // pred_fallthru
          _
        // Predicated region
        $region17: #{tpu_custom_call.1} parent=11 // pred_check
          %p161 = pneg %p85
        $region18: #{tpu_custom_call.1} parent=11 // pred_check_branch
          %163 = sbr.rel (%p161) target = $region20
        $region19: #{tpu_custom_call.1} parent=11 // pred_region
          %165 = vsyncadd [#allocation6], 0
          %s166 = sshll.u32 %s2, 4
          %s167 = int_to_ptr.hbm [resolvable:$true] %s166
          %s168 = sshll.u32 [#allocation7], 4
          %s169 = int_to_ptr.vmem [resolvable:$true] %s168
          %174 = dma.hbm_to_vmem [thread:$0]  %s167, 2048, %s169, [#allocation6], 128, 128, 8
        $region20: #{tpu_custom_call.1} parent=11 // pred_fallthru
          _
        // Predicated region
        $region21: #{tpu_custom_call.1} parent=11 // pred_check
          %p175 = pneg %p106
        $region22: #{tpu_custom_call.1} parent=11 // pred_check_branch
          %177 = sbr.rel (%p175) target = $region24
        $region23: #{tpu_custom_call.1} parent=11 // pred_region
          _
        $region24: #{tpu_custom_call.1} parent=11 // pred_fallthru
          _
      $region12: #{tpu_custom_call.1} parent=5 // pred_fallthru
        _
      %p178 = scmp.lt.s32.totalorder %s17, 2
      // Predicated region
      $region25: #{tpu_custom_call.1} parent=5 // pred_check
        %p179 = pneg %p178
      $region26: #{tpu_custom_call.1} parent=5 // pred_check_branch
        %181 = sbr.rel (%p179) target = $region28
      $region27: #{tpu_custom_call.1} parent=5 // pred_region
        // Predicated region
        $region29: #{tpu_custom_call.1} parent=27 // pred_check
          %p182 = pneg %p37
        $region30: #{tpu_custom_call.1} parent=27 // pred_check_branch
          %184 = sbr.rel (%p182) target = $region32
        $region31: #{tpu_custom_call.1} parent=27 // pred_region
          %s185 = sand.u32 %s27, 1
          %s186 = scalar_lea.sflag [#allocation3], %s185
          %s187 = sand.u32 %s27, 1
          %s188 = smul.addr %s187, 8
          %s189 = scalar_lea.vmem [#allocation2], %s188
          %191 = vsyncadd %s186, 0
          %s192 = smul.addr %s17, 8
          %s193 = scalar_lea.hbm %s0, %s192
          %s195 = sshll.u32 %s193, 4
          %s196 = int_to_ptr.hbm [resolvable:$true] %s195
          %s197 = sshll.u32 %s189, 4
          %s198 = int_to_ptr.vmem [resolvable:$true] %s197
          %200 = dma.hbm_to_vmem [thread:$0]  %s196, 128, %s198, %s186
        $region32: #{tpu_custom_call.1} parent=27 // pred_fallthru
          _
      $region28: #{tpu_custom_call.1} parent=5 // pred_fallthru
        _
      %p201 = scmp.le.s32.totalorder 1, %s17
      %p202 = scmp.lt.s32.totalorder %s17, 3
      %p203 = pnand %p201, %p202
      %p204 = pneg %p203
      // Predicated region
      $region33: #{tpu_custom_call.1} parent=5 // pred_check
        _
      $region34: #{tpu_custom_call.1} parent=5 // pred_check_branch
        %206 = sbr.rel (%p203) target = $region36
      $region35: #{tpu_custom_call.1} parent=5 // pred_region
        %s207 = ssub.s32 %s17, 1
        %s208 = sand.u32 %s30, 1
        %s209 = scalar_lea.sflag [#allocation3], %s208
        %s210 = sand.u32 %s30, 1
        %s211 = smul.addr %s210, 8
        %s212 = scalar_lea.vmem [#allocation2], %s211
        // Predicated region
        $region37: #{tpu_custom_call.1} parent=35 // pred_check
          %p213 = pneg %p43
        $region38: #{tpu_custom_call.1} parent=35 // pred_check_branch
          %215 = sbr.rel (%p213) target = $region40
        $region39: #{tpu_custom_call.1} parent=35 // pred_region
          %217 = dma.done %s209, 128
        $region40: #{tpu_custom_call.1} parent=35 // pred_fallthru
          _
        // Predicated region
        $region41: #{tpu_custom_call.1} parent=35 // pred_check
          %p218 = pneg %p64
        $region42: #{tpu_custom_call.1} parent=35 // pred_check_branch
          %220 = sbr.rel (%p218) target = $region44
        $region43: #{tpu_custom_call.1} parent=35 // pred_region
          %222 = dma.done [#allocation6], 6144
        $region44: #{tpu_custom_call.1} parent=35 // pred_fallthru
          _
        // Predicated region
        $region45: #{tpu_custom_call.1} parent=35 // pred_check
          %p223 = pneg %p85
        $region46: #{tpu_custom_call.1} parent=35 // pred_check_branch
          %225 = sbr.rel (%p223) target = $region48
        $region47: #{tpu_custom_call.1} parent=35 // pred_region
          %227 = dma.done [#allocation6], 2048
        $region48: #{tpu_custom_call.1} parent=35 // pred_fallthru
          _
        %s228 = sand.u32 %s30, 1
        %s229 = scalar_lea.sflag [#allocation3], %s228
        %s230 = sand.u32 %s30, 1
        %s231 = smul.addr %s230, 8
        %s232 = scalar_lea.vmem [#allocation2], %s231
        %p233 = pneg %p43
        %p234 = pneg %p40
        %p235 = pneg %p64
        %p236 = pneg %p61
        %p237 = pneg %p85
        %p238 = pneg %p82
        %p239 = pneg %p106
        %p240 = pneg %p103
        %p241 = pneg %p132
        %p242 = pneg %p129
        %s243 = sand.u32 %s119, 1
        %s244 = scalar_lea.sflag [#allocation4], %s243
        %s245 = sand.u32 %s119, 1
        %s246 = smul.addr %s245, 8
        %s247 = scalar_lea.vmem [#allocation8], %s246
        %v248 = vld [vmem:[%s212] sm:$0xff]
        %v249 = vld [vmem:[#allocation5] sm:$0xff]
        %v250 = vld [vmem:[#allocation5 + $0x8] sm:$0xff]
        %v251 = vld [vmem:[#allocation5 + $0x10] sm:$0xff]
        %v252 = vld [vmem:[#allocation5 + $0x18] sm:$0xff]
        %v253 = vld [vmem:[#allocation5 + $0x20] sm:$0xff]
        %v254 = vld [vmem:[#allocation5 + $0x28] sm:$0xff]
        %v255 = vld [vmem:[#allocation5 + $0x30] sm:$0xff]
        %v256 = vld [vmem:[#allocation5 + $0x38] sm:$0xff]
        %v257 = vld [vmem:[#allocation5 + $0x40] sm:$0xff]
        %v258 = vld [vmem:[#allocation5 + $0x48] sm:$0xff]
        %v259 = vld [vmem:[#allocation5 + $0x50] sm:$0xff]
        %v260 = vld [vmem:[#allocation5 + $0x58] sm:$0xff]
        %v261 = vld [vmem:[#allocation5 + $0x60] sm:$0xff]
        %v262 = vld [vmem:[#allocation5 + $0x68] sm:$0xff]
        %v263 = vld [vmem:[#allocation5 + $0x70] sm:$0xff]
        %v264 = vld [vmem:[#allocation5 + $0x78] sm:$0xff]
        %v265 = vld [vmem:[#allocation5 + $0x80] sm:$0xff]
        %v266 = vld [vmem:[#allocation5 + $0x88] sm:$0xff]
        %v267 = vld [vmem:[#allocation5 + $0x90] sm:$0xff]
        %v268 = vld [vmem:[#allocation5 + $0x98] sm:$0xff]
        %v269 = vld [vmem:[#allocation5 + $0xa0] sm:$0xff]
        %v270 = vld [vmem:[#allocation5 + $0xa8] sm:$0xff]
        %v271 = vld [vmem:[#allocation5 + $0xb0] sm:$0xff]
        %v272 = vld [vmem:[#allocation5 + $0xb8] sm:$0xff]
        %v273 = vld [vmem:[#allocation5 + $0xc0] sm:$0xff]
        %v274 = vld [vmem:[#allocation5 + $0xc8] sm:$0xff]
        %v275 = vld [vmem:[#allocation5 + $0xd0] sm:$0xff]
        %v276 = vld [vmem:[#allocation5 + $0xd8] sm:$0xff]
        %v277 = vld [vmem:[#allocation5 + $0xe0] sm:$0xff]
        %v278 = vld [vmem:[#allocation5 + $0xe8] sm:$0xff]
        %v279 = vld [vmem:[#allocation5 + $0xf0] sm:$0xff]
        %v280 = vld [vmem:[#allocation5 + $0xf8] sm:$0xff]
        %v281 = vld [vmem:[#allocation5 + $0x100] sm:$0xff]
        %v282 = vld [vmem:[#allocation5 + $0x108] sm:$0xff]
        %v283 = vld [vmem:[#allocation5 + $0x110] sm:$0xff]
        %v284 = vld [vmem:[#allocation5 + $0x118] sm:$0xff]
        %v285 = vld [vmem:[#allocation5 + $0x120] sm:$0xff]
        %v286 = vld [vmem:[#allocation5 + $0x128] sm:$0xff]
        %v287 = vld [vmem:[#allocation5 + $0x130] sm:$0xff]
        %v288 = vld [vmem:[#allocation5 + $0x138] sm:$0xff]
        %v289 = vld [vmem:[#allocation5 + $0x140] sm:$0xff]
        %v290 = vld [vmem:[#allocation5 + $0x148] sm:$0xff]
        %v291 = vld [vmem:[#allocation5 + $0x150] sm:$0xff]
        %v292 = vld [vmem:[#allocation5 + $0x158] sm:$0xff]
        %v293 = vld [vmem:[#allocation5 + $0x160] sm:$0xff]
        %v294 = vld [vmem:[#allocation5 + $0x168] sm:$0xff]
        %v295 = vld [vmem:[#allocation5 + $0x170] sm:$0xff]
        %v296 = vld [vmem:[#allocation5 + $0x178] sm:$0xff]
        %297 = vmatpush.msra.mxu0 %v294
        %298 = vmatpush.msra.mxu0 %v291
        %299 = vmatpush.msra.mxu0 %v288
        %300 = vmatpush.msra.mxu0 %v285
        %301 = vmatpush.msra.mxu0 %v282
        %302 = vmatpush.msra.mxu0 %v279
        %303 = vmatpush.msra.mxu0 %v276
        %304 = vmatpush.msra.mxu0 %v273
        %305 = vmatpush.msra.mxu0 %v270
        %306 = vmatpush.msra.mxu0 %v267
        %307 = vmatpush.msra.mxu0 %v264
        %308 = vmatpush.msra.mxu0 %v261
        %309 = vmatpush.msra.mxu0 %v258
        %310 = vmatpush.msra.mxu0 %v255
        %311 = vmatpush.msra.mxu0 %v252
        %312 = vmatpush.msra.mxu0 %v249
        %313 = vmatmul.f32.gmra.mxu0 %v248
        %v314 = vpop.f32.mrf.mxu0
        %v315 = vadd.f32 0.0, %v314
        %316 = vdwg.mxu0
        %317 = vmatpush.msra.mxu0 %v295
        %318 = vmatpush.msra.mxu0 %v292
        %319 = vmatpush.msra.mxu0 %v289
        %320 = vmatpush.msra.mxu0 %v286
        %321 = vmatpush.msra.mxu0 %v283
        %322 = vmatpush.msra.mxu0 %v280
        %323 = vmatpush.msra.mxu0 %v277
        %324 = vmatpush.msra.mxu0 %v274
        %325 = vmatpush.msra.mxu0 %v271
        %326 = vmatpush.msra.mxu0 %v268
        %327 = vmatpush.msra.mxu0 %v265
        %328 = vmatpush.msra.mxu0 %v262
        %329 = vmatpush.msra.mxu0 %v259
        %330 = vmatpush.msra.mxu0 %v256
        %331 = vmatpush.msra.mxu0 %v253
        %332 = vmatpush.msra.mxu0 %v250
        %333 = vmatmul.f32.gmra.mxu0 %v248
        %v334 = vpop.f32.mrf.mxu0
        %v335 = vadd.f32 0.0, %v334
        %336 = vdwg.mxu0
        %337 = vmatpush.msra.mxu0 %v296
        %338 = vmatpush.msra.mxu0 %v293
        %339 = vmatpush.msra.mxu0 %v290
        %340 = vmatpush.msra.mxu0 %v287
        %341 = vmatpush.msra.mxu0 %v284
        %342 = vmatpush.msra.mxu0 %v281
        %343 = vmatpush.msra.mxu0 %v278
        %344 = vmatpush.msra.mxu0 %v275
        %345 = vmatpush.msra.mxu0 %v272
        %346 = vmatpush.msra.mxu0 %v269
        %347 = vmatpush.msra.mxu0 %v266
        %348 = vmatpush.msra.mxu0 %v263
        %349 = vmatpush.msra.mxu0 %v260
        %350 = vmatpush.msra.mxu0 %v257
        %351 = vmatpush.msra.mxu0 %v254
        %352 = vmatpush.msra.mxu0 %v251
        %353 = vmatmul.f32.gmra.mxu0 %v248
        %v354 = vpop.f32.mrf.mxu0
        %v355 = vadd.f32 0.0, %v354
        %356 = vdwg.mxu0
        %v357 = vlaneseq
        %v358 = vshrl.u32 %v357, 7
        %v359 = vlaneseq
        %v360 = vand.u32 %v359, 127
        %vm361 = vcmp.le.s32.totalorder %v360, %v358
        %vm362 = vcmask 261120
        %v364 = vsel %vm362, %v315, 0
        %v367 = vsel %vm362, %v335, 0
        %369 = vmatpush.xpose.msra.mxu0 0.0
        %370 = vmatpush.xpose.msra.mxu0 0.0
        %371 = vmatpush.xpose.msra.mxu0 0.0
        %372 = vmatpush.xpose.msra.mxu0 0.0
        %373 = vmatpush.xpose.msra.mxu0 0.0
        %374 = vmatpush.xpose.msra.mxu0 0.0
        %375 = vmatpush.xpose.msra.mxu0 0.0
        %376 = vmatpush.xpose.msra.mxu0 0.0
        %377 = vmatpush.xpose.msra.mxu0 0.0
        %378 = vmatpush.xpose.msra.mxu0 0.0
        %379 = vmatpush.xpose.msra.mxu0 0.0
        %380 = vmatpush.xpose.msra.mxu0 0.0
        %381 = vmatpush.xpose.msra.mxu0 0.0
        %382 = vmatpush.xpose.msra.mxu0 0.0
        %383 = vmatpush.xpose.msra.mxu0 0.0
        %384 = vmatpush.xpose.msra.mxu0 %v367
        %385 = vmatmul.f32.gmra.mxu0 %v364
        %v386 = vpop.f32.mrf.mxu0
        %v387 = vadd.f32 0.0, %v386
        %388 = vdwg.mxu0
        %v389 = vsel %vm361, %v387, -inf
        %vm390 = vcmask 64512
        %v391 = vsel %vm390, %v389, -inf
        %392 = vmax.xlane.f32.xlu0 %v391
        %v393 = vpop.xlane.xlu0 %392
        %v394 = vsub.f32 %v389, %v393
        %v395 = vmul.f32 %v394, 1.442695
        %v396 = vpow.pop %v395
        %v397 = vsel %vm390, %v396, 0.0
        %398 = vadd.xlane.f32.xlu0 %v397
        %v399 = vpop.xlane.xlu0 %398
        %v400 = vrcp.pop %v399
        %v401 = vmul.f32 %v396, %v400
        %v403 = vsel %vm390, %v401, 0
        %405 = vmatpush.msra.mxu0 0.0
        %406 = vmatpush.msra.mxu0 0.0
        %407 = vmatpush.msra.mxu0 0.0
        %408 = vmatpush.msra.mxu0 0.0
        %409 = vmatpush.msra.mxu0 0.0
        %410 = vmatpush.msra.mxu0 0.0
        %411 = vmatpush.msra.mxu0 0.0
        %412 = vmatpush.msra.mxu0 0.0
        %413 = vmatpush.msra.mxu0 0.0
        %414 = vmatpush.msra.mxu0 0.0
        %415 = vmatpush.msra.mxu0 0.0
        %416 = vmatpush.msra.mxu0 0.0
        %417 = vmatpush.msra.mxu0 0.0
        %418 = vmatpush.msra.mxu0 0.0
        %419 = vmatpush.msra.mxu0 0.0
        %420 = vmatpush.msra.mxu0 %v355
        %421 = vmatmul.f32.gmra.mxu0 %v403
        %v422 = vpop.f32.mrf.mxu0
        %v423 = vadd.f32 0.0, %v422
        %424 = vdwg.mxu0
        %v425 = vld [vmem:[#allocation7] sm:$0xff]
        %v426 = vld [vmem:[#allocation7 + $0x8] sm:$0xff]
        %v427 = vld [vmem:[#allocation7 + $0x10] sm:$0xff]
        %v428 = vld [vmem:[#allocation7 + $0x18] sm:$0xff]
        %429 = vrot.lane.b32.xlu0 %v315, 96
        %v430 = vpop.permute.xlu0 %429
        %431 = vrot.lane.b32.xlu0 %v335, 96
        %v432 = vpop.permute.xlu0 %431
        %v433 = vsel %vm362, %v430, 0
        %v435 = vsel %vm362, %v432, 0
        %437 = vmatpush.xpose.msra.mxu0 0.0
        %438 = vmatpush.xpose.msra.mxu0 0.0
        %439 = vmatpush.xpose.msra.mxu0 0.0
        %440 = vmatpush.xpose.msra.mxu0 0.0
        %441 = vmatpush.xpose.msra.mxu0 0.0
        %442 = vmatpush.xpose.msra.mxu0 0.0
        %443 = vmatpush.xpose.msra.mxu0 0.0
        %444 = vmatpush.xpose.msra.mxu0 0.0
        %445 = vmatpush.xpose.msra.mxu0 0.0
        %446 = vmatpush.xpose.msra.mxu0 0.0
        %447 = vmatpush.xpose.msra.mxu0 0.0
        %448 = vmatpush.xpose.msra.mxu0 0.0
        %449 = vmatpush.xpose.msra.mxu0 0.0
        %450 = vmatpush.xpose.msra.mxu0 0.0
        %451 = vmatpush.xpose.msra.mxu0 0.0
        %452 = vmatpush.xpose.msra.mxu0 %v435
        %453 = vmatmul.f32.gmra.mxu0 %v433
        %v454 = vpop.f32.mrf.mxu0
        %v455 = vadd.f32 0.0, %v454
        %456 = vdwg.mxu0
        %v457 = vsel %vm361, %v455, -inf
        %v458 = vsel %vm390, %v457, -inf
        %459 = vmax.xlane.f32.xlu0 %v458
        %v460 = vpop.xlane.xlu0 %459
        %v461 = vsub.f32 %v457, %v460
        %v462 = vmul.f32 %v461, 1.442695
        %v463 = vpow.pop %v462
        %v464 = vsel %vm390, %v463, 0.0
        %465 = vadd.xlane.f32.xlu0 %v464
        %v466 = vpop.xlane.xlu0 %465
        %v467 = vrcp.pop %v466
        %v468 = vmul.f32 %v463, %v467
        %470 = vrot.lane.b32.xlu0 %v355, 96
        %v471 = vpop.permute.xlu0 %470
        %v474 = vsel %vm390, %v468, 0
        %476 = vmatpush.msra.mxu0 0.0
        %477 = vmatpush.msra.mxu0 0.0
        %478 = vmatpush.msra.mxu0 0.0
        %479 = vmatpush.msra.mxu0 0.0
        %480 = vmatpush.msra.mxu0 0.0
        %481 = vmatpush.msra.mxu0 0.0
        %482 = vmatpush.msra.mxu0 0.0
        %483 = vmatpush.msra.mxu0 0.0
        %484 = vmatpush.msra.mxu0 0.0
        %485 = vmatpush.msra.mxu0 0.0
        %486 = vmatpush.msra.mxu0 0.0
        %487 = vmatpush.msra.mxu0 0.0
        %488 = vmatpush.msra.mxu0 0.0
        %489 = vmatpush.msra.mxu0 0.0
        %490 = vmatpush.msra.mxu0 0.0
        %491 = vmatpush.msra.mxu0 %v471
        %492 = vmatmul.f32.gmra.mxu0 %v474
        %v493 = vpop.f32.mrf.mxu0
        %v494 = vadd.f32 0.0, %v493
        %495 = vdwg.mxu0
        %v496 = vld [vmem:[#allocation7 + $0x20] sm:$0xff]
        %v497 = vld [vmem:[#allocation7 + $0x28] sm:$0xff]
        %v498 = vld [vmem:[#allocation7 + $0x30] sm:$0xff]
        %v499 = vld [vmem:[#allocation7 + $0x38] sm:$0xff]
        %v501 = vsel %vm362, %v494, 0
        %503 = vmatpush.msra.mxu0 0.0
        %504 = vmatpush.msra.mxu0 0.0
        %505 = vmatpush.msra.mxu0 0.0
        %506 = vmatpush.msra.mxu0 0.0
        %507 = vmatpush.msra.mxu0 0.0
        %508 = vmatpush.msra.mxu0 0.0
        %509 = vmatpush.msra.mxu0 0.0
        %510 = vmatpush.msra.mxu0 0.0
        %511 = vmatpush.msra.mxu0 0.0
        %512 = vmatpush.msra.mxu0 0.0
        %513 = vmatpush.msra.mxu0 0.0
        %514 = vmatpush.msra.mxu0 0.0
        %515 = vmatpush.msra.mxu0 %v499
        %516 = vmatpush.msra.mxu0 %v498
        %517 = vmatpush.msra.mxu0 %v497
        %518 = vmatpush.msra.mxu0 %v496
        %519 = vmatmul.f32.gmra.mxu0 %v501
        %v520 = vpop.f32.mrf.mxu0
        %v521 = vadd.f32 0.0, %v520
        %522 = vdwg.mxu0
        %v524 = vsel %vm362, %v423, 0
        %526 = vmatpush.msra.mxu0 0.0
        %527 = vmatpush.msra.mxu0 0.0
        %528 = vmatpush.msra.mxu0 0.0
        %529 = vmatpush.msra.mxu0 0.0
        %530 = vmatpush.msra.mxu0 0.0
        %531 = vmatpush.msra.mxu0 0.0
        %532 = vmatpush.msra.mxu0 0.0
        %533 = vmatpush.msra.mxu0 0.0
        %534 = vmatpush.msra.mxu0 0.0
        %535 = vmatpush.msra.mxu0 0.0
        %536 = vmatpush.msra.mxu0 0.0
        %537 = vmatpush.msra.mxu0 0.0
        %538 = vmatpush.msra.mxu0 %v428
        %539 = vmatpush.msra.mxu0 %v427
        %540 = vmatpush.msra.mxu0 %v426
        %541 = vmatpush.msra.mxu0 %v425
        %542 = vmatmul.f32.gmra.mxu0 %v524
        %v543 = vpop.f32.mrf.mxu0
        %v544 = vadd.f32 %v521, %v543
        %545 = vdwg.mxu0
        %546 = vrot.lane.b32.xlu0 %v315, 64
        %v547 = vpop.permute.xlu0 %546
        %548 = vrot.lane.b32.xlu0 %v335, 64
        %v549 = vpop.permute.xlu0 %548
        %v550 = vsel %vm362, %v547, 0
        %v552 = vsel %vm362, %v549, 0
        %554 = vmatpush.xpose.msra.mxu0 0.0
        %555 = vmatpush.xpose.msra.mxu0 0.0
        %556 = vmatpush.xpose.msra.mxu0 0.0
        %557 = vmatpush.xpose.msra.mxu0 0.0
        %558 = vmatpush.xpose.msra.mxu0 0.0
        %559 = vmatpush.xpose.msra.mxu0 0.0
        %560 = vmatpush.xpose.msra.mxu0 0.0
        %561 = vmatpush.xpose.msra.mxu0 0.0
        %562 = vmatpush.xpose.msra.mxu0 0.0
        %563 = vmatpush.xpose.msra.mxu0 0.0
        %564 = vmatpush.xpose.msra.mxu0 0.0
        %565 = vmatpush.xpose.msra.mxu0 0.0
        %566 = vmatpush.xpose.msra.mxu0 0.0
        %567 = vmatpush.xpose.msra.mxu0 0.0
        %568 = vmatpush.xpose.msra.mxu0 0.0
        %569 = vmatpush.xpose.msra.mxu0 %v552
        %570 = vmatmul.f32.gmra.mxu0 %v550
        %v571 = vpop.f32.mrf.mxu0
        %v572 = vadd.f32 0.0, %v571
        %573 = vdwg.mxu0
        %v574 = vsel %vm361, %v572, -inf
        %v575 = vsel %vm390, %v574, -inf
        %576 = vmax.xlane.f32.xlu0 %v575
        %v577 = vpop.xlane.xlu0 %576
        %v578 = vsub.f32 %v574, %v577
        %v579 = vmul.f32 %v578, 1.442695
        %v580 = vpow.pop %v579
        %v581 = vsel %vm390, %v580, 0.0
        %582 = vadd.xlane.f32.xlu0 %v581
        %v583 = vpop.xlane.xlu0 %582
        %v584 = vrcp.pop %v583
        %v585 = vmul.f32 %v580, %v584
        %586 = vrot.lane.b32.xlu0 %v355, 64
        %v587 = vpop.permute.xlu0 %586
        %v590 = vsel %vm390, %v585, 0
        %592 = vmatpush.msra.mxu0 0.0
        %593 = vmatpush.msra.mxu0 0.0
        %594 = vmatpush.msra.mxu0 0.0
        %595 = vmatpush.msra.mxu0 0.0
        %596 = vmatpush.msra.mxu0 0.0
        %597 = vmatpush.msra.mxu0 0.0
        %598 = vmatpush.msra.mxu0 0.0
        %599 = vmatpush.msra.mxu0 0.0
        %600 = vmatpush.msra.mxu0 0.0
        %601 = vmatpush.msra.mxu0 0.0
        %602 = vmatpush.msra.mxu0 0.0
        %603 = vmatpush.msra.mxu0 0.0
        %604 = vmatpush.msra.mxu0 0.0
        %605 = vmatpush.msra.mxu0 0.0
        %606 = vmatpush.msra.mxu0 0.0
        %607 = vmatpush.msra.mxu0 %v587
        %608 = vmatmul.f32.gmra.mxu0 %v590
        %v609 = vpop.f32.mrf.mxu0
        %v610 = vadd.f32 0.0, %v609
        %611 = vdwg.mxu0
        %v612 = vld [vmem:[#allocation7 + $0x40] sm:$0xff]
        %v613 = vld [vmem:[#allocation7 + $0x48] sm:$0xff]
        %v614 = vld [vmem:[#allocation7 + $0x50] sm:$0xff]
        %v615 = vld [vmem:[#allocation7 + $0x58] sm:$0xff]
        %v617 = vsel %vm362, %v610, 0
        %619 = vmatpush.msra.mxu0 0.0
        %620 = vmatpush.msra.mxu0 0.0
        %621 = vmatpush.msra.mxu0 0.0
        %622 = vmatpush.msra.mxu0 0.0
        %623 = vmatpush.msra.mxu0 0.0
        %624 = vmatpush.msra.mxu0 0.0
        %625 = vmatpush.msra.mxu0 0.0
        %626 = vmatpush.msra.mxu0 0.0
        %627 = vmatpush.msra.mxu0 0.0
        %628 = vmatpush.msra.mxu0 0.0
        %629 = vmatpush.msra.mxu0 0.0
        %630 = vmatpush.msra.mxu0 0.0
        %631 = vmatpush.msra.mxu0 %v615
        %632 = vmatpush.msra.mxu0 %v614
        %633 = vmatpush.msra.mxu0 %v613
        %634 = vmatpush.msra.mxu0 %v612
        %635 = vmatmul.f32.gmra.mxu0 %v617
        %v636 = vpop.f32.mrf.mxu0
        %v637 = vadd.f32 0.0, %v636
        %638 = vdwg.mxu0
        %v639 = vadd.f32 %v544, %v637
        %640 = vrot.lane.b32.xlu0 %v315, 32
        %v641 = vpop.permute.xlu0 %640
        %642 = vrot.lane.b32.xlu0 %v335, 32
        %v643 = vpop.permute.xlu0 %642
        %v644 = vsel %vm362, %v641, 0
        %v646 = vsel %vm362, %v643, 0
        %648 = vmatpush.xpose.msra.mxu0 0.0
        %649 = vmatpush.xpose.msra.mxu0 0.0
        %650 = vmatpush.xpose.msra.mxu0 0.0
        %651 = vmatpush.xpose.msra.mxu0 0.0
        %652 = vmatpush.xpose.msra.mxu0 0.0
        %653 = vmatpush.xpose.msra.mxu0 0.0
        %654 = vmatpush.xpose.msra.mxu0 0.0
        %655 = vmatpush.xpose.msra.mxu0 0.0
        %656 = vmatpush.xpose.msra.mxu0 0.0
        %657 = vmatpush.xpose.msra.mxu0 0.0
        %658 = vmatpush.xpose.msra.mxu0 0.0
        %659 = vmatpush.xpose.msra.mxu0 0.0
        %660 = vmatpush.xpose.msra.mxu0 0.0
        %661 = vmatpush.xpose.msra.mxu0 0.0
        %662 = vmatpush.xpose.msra.mxu0 0.0
        %663 = vmatpush.xpose.msra.mxu0 %v646
        %664 = vmatmul.f32.gmra.mxu0 %v644
        %v665 = vpop.f32.mrf.mxu0
        %v666 = vadd.f32 0.0, %v665
        %667 = vdwg.mxu0
        %v668 = vsel %vm361, %v666, -inf
        %v669 = vsel %vm390, %v668, -inf
        %670 = vmax.xlane.f32.xlu0 %v669
        %v671 = vpop.xlane.xlu0 %670
        %v672 = vsub.f32 %v668, %v671
        %v673 = vmul.f32 %v672, 1.442695
        %v674 = vpow.pop %v673
        %v675 = vsel %vm390, %v674, 0.0
        %676 = vadd.xlane.f32.xlu0 %v675
        %v677 = vpop.xlane.xlu0 %676
        %v678 = vrcp.pop %v677
        %v679 = vmul.f32 %v674, %v678
        %680 = vrot.lane.b32.xlu0 %v355, 32
        %v681 = vpop.permute.xlu0 %680
        %v684 = vsel %vm390, %v679, 0
        %686 = vmatpush.msra.mxu0 0.0
        %687 = vmatpush.msra.mxu0 0.0
        %688 = vmatpush.msra.mxu0 0.0
        %689 = vmatpush.msra.mxu0 0.0
        %690 = vmatpush.msra.mxu0 0.0
        %691 = vmatpush.msra.mxu0 0.0
        %692 = vmatpush.msra.mxu0 0.0
        %693 = vmatpush.msra.mxu0 0.0
        %694 = vmatpush.msra.mxu0 0.0
        %695 = vmatpush.msra.mxu0 0.0
        %696 = vmatpush.msra.mxu0 0.0
        %697 = vmatpush.msra.mxu0 0.0
        %698 = vmatpush.msra.mxu0 0.0
        %699 = vmatpush.msra.mxu0 0.0
        %700 = vmatpush.msra.mxu0 0.0
        %701 = vmatpush.msra.mxu0 %v681
        %702 = vmatmul.f32.gmra.mxu0 %v684
        %v703 = vpop.f32.mrf.mxu0
        %v704 = vadd.f32 0.0, %v703
        %705 = vdwg.mxu0
        %v706 = vld [vmem:[#allocation7 + $0x60] sm:$0xff]
        %v707 = vld [vmem:[#allocation7 + $0x68] sm:$0xff]
        %v708 = vld [vmem:[#allocation7 + $0x70] sm:$0xff]
        %v709 = vld [vmem:[#allocation7 + $0x78] sm:$0xff]
        %v711 = vsel %vm362, %v704, 0
        %713 = vmatpush.msra.mxu0 0.0
        %714 = vmatpush.msra.mxu0 0.0
        %715 = vmatpush.msra.mxu0 0.0
        %716 = vmatpush.msra.mxu0 0.0
        %717 = vmatpush.msra.mxu0 0.0
        %718 = vmatpush.msra.mxu0 0.0
        %719 = vmatpush.msra.mxu0 0.0
        %720 = vmatpush.msra.mxu0 0.0
        %721 = vmatpush.msra.mxu0 0.0
        %722 = vmatpush.msra.mxu0 0.0
        %723 = vmatpush.msra.mxu0 0.0
        %724 = vmatpush.msra.mxu0 0.0
        %725 = vmatpush.msra.mxu0 %v709
        %726 = vmatpush.msra.mxu0 %v708
        %727 = vmatpush.msra.mxu0 %v707
        %728 = vmatpush.msra.mxu0 %v706
        %729 = vmatmul.f32.gmra.mxu0 %v711
        %v730 = vpop.f32.mrf.mxu0
        %v731 = vadd.f32 0.0, %v730
        %732 = vdwg.mxu0
        %v733 = vadd.f32 %v639, %v731
        %v734 = vld [vmem:[%s3] sm:$0x1]
        %v736 = vperm.slane %v734, 0
        %v738 = vadd.f32 %v733, %v736
        %739 = vst [vmem:[%s247] sm:$0xff] %v738
        %s740 = sand.u32 %s119, 1
        %s741 = scalar_lea.sflag [#allocation4], %s740
        %s742 = sand.u32 %s119, 1
        %s743 = smul.addr %s742, 8
        %s744 = scalar_lea.vmem [#allocation8], %s743
        // Predicated region
        $region49: #{tpu_custom_call.1} parent=35 // pred_check
          %p745 = pneg %p129
        $region50: #{tpu_custom_call.1} parent=35 // pred_check_branch
          %747 = sbr.rel (%p745) target = $region52
        $region51: #{tpu_custom_call.1} parent=35 // pred_region
          %749 = vsyncadd %s741, 0
          %s750 = smul.addr %s22, 8
          %s751 = scalar_lea.hbm %s4, %s750
          %s753 = sshll.u32 %s744, 4
          %s754 = int_to_ptr.vmem [resolvable:$true] %s753
          %s755 = sshll.u32 %s751, 4
          %s756 = int_to_ptr.hbm [resolvable:$true] %s755
          %758 = dma.vmem_to_hbm [thread:$0]  %s754, 128, %s756, %s741
        $region52: #{tpu_custom_call.1} parent=35 // pred_fallthru
          _
      $region36: #{tpu_custom_call.1} parent=5 // pred_fallthru
        _
      %p759 = scmp.le.s32.totalorder 2, %s17
      // Predicated region
      $region53: #{tpu_custom_call.1} parent=5 // pred_check
        %p760 = pneg %p759
      $region54: #{tpu_custom_call.1} parent=5 // pred_check_branch
        %762 = sbr.rel (%p760) target = $region56
      $region55: #{tpu_custom_call.1} parent=5 // pred_region
        %s763 = ssub.s32 %s17, 2
        // Predicated region
        $region57: #{tpu_custom_call.1} parent=55 // pred_check
          %p764 = pneg %p135
        $region58: #{tpu_custom_call.1} parent=55 // pred_check_branch
          %766 = sbr.rel (%p764) target = $region60
        $region59: #{tpu_custom_call.1} parent=55 // pred_region
          %s767 = sand.u32 %s120, 1
          %s768 = scalar_lea.sflag [#allocation4], %s767
          %s769 = sand.u32 %s120, 1
          %s770 = smul.addr %s769, 8
          %s771 = scalar_lea.vmem [#allocation8], %s770
          %773 = dma.done %s768, 128
        $region60: #{tpu_custom_call.1} parent=55 // pred_fallthru
          _
      $region56: #{tpu_custom_call.1} parent=5 // pred_fallthru
        _
    $region6: #{tpu_custom_call.1} parent=1 // loop_footer
      %s21 = sadd.s32 1, %s17
    $region7: #{tpu_custom_call.1} parent=1 // loop_footer_branch
      %16 = sbr.rel target = $region3
    $region8: #{tpu_custom_call.1} parent=1 // loop_exit
      _
    %774 = vsyncpa [#allocation3], 1
    %s775 = scalar_lea.sflag [#allocation3], 1
    %776 = vsyncpa %s775, 1
    %777 = vsyncpa [#allocation6], 1
    %778 = vsyncpa [#allocation4], 1
    %s779 = scalar_lea.sflag [#allocation4], 1
    %780 = vsyncpa %s779, 1

</llo_original>
